<compile_context>
chip_gen: v7x
topology: tpu7x:2x2x1
jax: 0.10.0
libtpu: 0.0.40
codegen_flags: <defaults>
</compile_context>

<pallas_src>
import functools

import jax
import jax.numpy as jnp
from jax.experimental import pallas as pl
from jax.experimental.pallas import tpu as pltpu

EPSILON = 1e-10

_LANE = 128
_BLOCK_BUDGET_BYTES = 4 << 20          # ~4 MiB per data-operand block
_EW_BLOCK_ELEMS = _BLOCK_BUDGET_BYTES // 4   # f32 elements per elementwise block
_EW_MAX_TC = 16384                     # lane-tile cap for the elementwise path


def _derive_vmem_limit():
    """Generation-aware scoped-VMEM limit (leave headroom for compiler scratch)."""
    try:
        cap = pltpu.get_tpu_info().vmem_capacity_bytes
    except Exception:
        cap = 128 * 1024 * 1024
    # v7x (64 MiB physical) -> 48 MiB; v5e/v6e (128 MiB) -> 64 MiB.
    return int(min(64 * 1024 * 1024, (cap * 3) // 4))


_VMEM_LIMIT = _derive_vmem_limit()


def _round_up(x, m):
    return ((x + m - 1) // m) * m


# -----------------------------------------------------------------------------
# Kernels
# -----------------------------------------------------------------------------
def _ew_kernel(a_ref, b_ref, o_ref, *, mode):
    a = a_ref[...]
    b = b_ref[...]
    if mode == "add":
        o_ref[...] = a + b
    elif mode == "avg":
        o_ref[...] = (a + b) * 0.5
    else:  # "max"
        o_ref[...] = jnp.maximum(a, b)


def _spa_kernel(a_ref, b_ref, o_ref):
    # refs are (C, THW): channel axis on sublanes, pixels on lanes.
    a = a_ref[...]
    b = b_ref[...]
    s1 = jnp.mean(a, axis=0, keepdims=True)          # (1, THW) sublane reduce
    s2 = jnp.mean(b, axis=0, keepdims=True)
    e1 = jnp.exp(s1)
    e2 = jnp.exp(s2)
    inv = pl.reciprocal(e1 + e2 + EPSILON, approx=False)   # one recip, two muls
    o_ref[...] = (e1 * inv) * a + (e2 * inv) * b


def _cat_kernel(a_ref, b_ref, w1_ref, w2_ref, bias_ref, o_ref):
    # conv1x1 on cat((a, b), C) == W[:, :C] @ a + W[:, C:] @ b + bias
    # a_ref/b_ref: (C, THW); w*_ref: (C_out, C); bias_ref: (C_out, 1)
    acc = jnp.dot(w1_ref[...], a_ref[...], preferred_element_type=jnp.float32)
    acc = acc + jnp.dot(w2_ref[...], b_ref[...], preferred_element_type=jnp.float32)
    o_ref[...] = (acc + bias_ref[...]).astype(o_ref.dtype)
    # TODO(synk): on v5e at C>=256 the f32 MXU passes may become the bottleneck;
    # a bf16 weight/activation copy (preferred_element_type=f32) would fix it if
    # ~1e-3 tolerance is acceptable.


def _gated_kernel(t_ref, v_ref, wt_ref, bt_ref, wv_ref, bv_ref, o_ref):
    t = t_ref[...]                                    # (C, THW)
    v = v_ref[...]
    t_logit = jnp.dot(wt_ref[...], t, preferred_element_type=jnp.float32) + bt_ref[...]
    v_logit = jnp.dot(wv_ref[...], v, preferred_element_type=jnp.float32) + bv_ref[...]
    o_ref[...] = (jax.nn.sigmoid(t_logit) * t
                  + jax.nn.sigmoid(v_logit) * v).astype(o_ref.dtype)


# -----------------------------------------------------------------------------
# pallas_call wrappers
# -----------------------------------------------------------------------------
def _compiler_params(n_parallel):
    return pltpu.CompilerParams(
        dimension_semantics=("parallel",) * n_parallel,
        vmem_limit_bytes=_VMEM_LIMIT,
    )


def _ew_call(a4, b4, mode):
    """Elementwise fuse on the free (N*C, H*W) view of an NCHW tensor."""
    N, C, H, W = a4.shape
    R, HW = N * C, H * W
    a2 = a4.reshape(R, HW)          # free view, no padding / no extra HBM copy
    b2 = b4.reshape(R, HW)

    # lane tile: full row when it fits, else a large multiple of 512
    tc = HW if HW <= _EW_MAX_TC else _EW_MAX_TC
    # sublane tile from the per-operand block budget
    tr = max(8, (_EW_BLOCK_ELEMS // max(tc, 1)) // 8 * 8)
    tr = min(tr, R)

    # Ensure >= 2 grid steps so both v7x TensorCores get work (no-op on 1-TC).
    if pl.cdiv(R, tr) * pl.cdiv(HW, tc) == 1:
        if R >= 16:
            tr_half = min(R, _round_up(pl.cdiv(R, 2), 8))
            if tr_half < R:
                tr = tr_half
        if pl.cdiv(R, tr) * pl.cdiv(HW, tc) == 1 and HW >= 2 * _LANE:
            tc_half = _round_up(pl.cdiv(HW, 2), _LANE)
            if tc_half < HW:
                tc = tc_half

    grid = (pl.cdiv(R, tr), pl.cdiv(HW, tc))
    spec = pl.BlockSpec((tr, tc), lambda i, j: (i, j))

    out = pl.pallas_call(
        functools.partial(_ew_kernel, mode=mode),
        out_shape=jax.ShapeDtypeStruct((R, HW), a2.dtype),
        grid=grid,
        in_specs=[spec, spec],
        out_specs=spec,
        compiler_params=_compiler_params(2),
    )(a2, b2)
    return out.reshape(N, C, H, W)


def _choose_thw(HW, C):
    """Lane tile so one (C, THW) f32 block ~= the block budget.

    Returned value is either the full HW (always legal) or a multiple of 512
    (full MXU passes, unmasked stores), floored at 1024 when VMEM allows.
    """
    cap = max(_LANE, _BLOCK_BUDGET_BYTES // (4 * C))
    if HW <= cap:
        return HW
    if cap >= 512:
        thw = (cap // 512) * 512
    else:
        thw = (cap // _LANE) * _LANE
    if HW >= 1024 and C * 1024 * 4 <= 2 * _BLOCK_BUDGET_BYTES:
        thw = max(thw, 1024)
    return max(thw, _LANE)


def _data_grid(N, C, HW):
    thw = _choose_thw(HW, C)
    # Ensure >= 2 grid steps when possible (v7x dual TensorCore).
    if N * pl.cdiv(HW, thw) == 1 and HW >= 2 * _LANE:
        half = _round_up(pl.cdiv(HW, 2), _LANE)
        if half < HW:
            thw = half
    grid = (N, pl.cdiv(HW, thw))
    spec = pl.BlockSpec((None, C, thw), lambda n, j: (n, 0, j))
    return grid, spec


def _spa_call(a3, b3):
    N, C, HW = a3.shape
    grid, spec = _data_grid(N, C, HW)
    return pl.pallas_call(
        _spa_kernel,
        out_shape=jax.ShapeDtypeStruct((N, C, HW), a3.dtype),
        grid=grid,
        in_specs=[spec, spec],
        out_specs=spec,
        compiler_params=_compiler_params(2),
    )(a3, b3)


def _cat_call(a3, b3, w1, w2, bias):
    N, C, HW = a3.shape
    grid, data_spec = _data_grid(N, C, HW)
    w_spec = pl.BlockSpec((C, C), lambda n, j: (0, 0))
    b_spec = pl.BlockSpec((C, 1), lambda n, j: (0, 0))
    return pl.pallas_call(
        _cat_kernel,
        out_shape=jax.ShapeDtypeStruct((N, C, HW), a3.dtype),
        grid=grid,
        in_specs=[data_spec, data_spec, w_spec, w_spec, b_spec],
        out_specs=data_spec,
        compiler_params=_compiler_params(2),
    )(a3, b3, w1, w2, bias)


def _gated_call(t3, v3, wt, bt, wv, bv):
    N, C, HW = t3.shape
    grid, data_spec = _data_grid(N, C, HW)
    w_spec = pl.BlockSpec((C, C), lambda n, j: (0, 0))
    b_spec = pl.BlockSpec((C, 1), lambda n, j: (0, 0))
    return pl.pallas_call(
        _gated_kernel,
        out_shape=jax.ShapeDtypeStruct((N, C, HW), t3.dtype),
        grid=grid,
        in_specs=[data_spec, data_spec, w_spec, b_spec, w_spec, b_spec],
        out_specs=data_spec,
        compiler_params=_compiler_params(2),
    )(t3, v3, wt, bt, wv, bv)


# -----------------------------------------------------------------------------
# Fusion_strategy equivalent
# -----------------------------------------------------------------------------
class FusionStrategyPallas:
    """JAX/Pallas port of Fusion_strategy (deterministic conv1x1 init)."""

    def __init__(self, in_channels, key=jax.random.PRNGKey(42)):
        C = in_channels
        keys = jax.random.split(key, 8)
        scale_cat = 1.0 / jnp.sqrt(2.0 * C)   # PyTorch Conv2d default init bound
        scale_g = 1.0 / jnp.sqrt(1.0 * C)

        def u(k, shape, s):
            return jax.random.uniform(k, shape, jnp.float32, -s, s)

        # Fusion_CAT: Conv2d(2C, C, 1): weight (C_out=C, C_in=2C).
        # torch.cat((en_ir, en_vi), 1) with en_ir = v_feat, en_vi = t_feat:
        # W[:, :C] multiplies v_feat, W[:, C:] multiplies t_feat.
        w_cat = u(keys[0], (C, 2 * C), scale_cat)
        self.cat_w1 = w_cat[:, :C]
        self.cat_w2 = w_cat[:, C:]
        self.cat_b = u(keys[1], (C, 1), scale_cat)

        w_cat2 = u(keys[2], (C, 2 * C), scale_cat)
        self.cat2_w1 = w_cat2[:, :C]
        self.cat2_w2 = w_cat2[:, C:]
        self.cat2_b = u(keys[3], (C, 1), scale_cat)

        # Fusion_GATED: two Conv2d(C, C, 1), weights kept as (C_out, C_in).
        self.gated_wt = u(keys[4], (C, C), scale_g)
        self.gated_bt = u(keys[5], (C, 1), scale_g)
        self.gated_wv = u(keys[6], (C, C), scale_g)
        self.gated_bv = u(keys[7], (C, 1), scale_g)

    # ---- single-map fusion on an NCHW array pair ----
    def _fuse_one(self, v_feat, t_feat, fs_type):
        N, C, H, W = v_feat.shape

        if fs_type in ("add", "avg", "max"):
            return _ew_call(v_feat, t_feat, fs_type)

        # free view: NCHW -> (N, C, H*W); pixels land on the lane axis
        a3 = v_feat.reshape(N, C, H * W)
        b3 = t_feat.reshape(N, C, H * W)

        if fs_type == "spa":
            out3 = _spa_call(a3, b3)
        elif fs_type == "cat":
            out3 = _cat_call(a3, b3, self.cat_w1, self.cat_w2, self.cat_b)
        elif fs_type == "cat2":
            out3 = _cat_call(a3, b3, self.cat2_w1, self.cat2_w2, self.cat2_b)
        elif fs_type == "gated":
            # Fusion_GATED.forward(t_feat, v_feat) is invoked as
            # fusion_operation(v_feat, t_feat): first arg goes through t_conv1x1.
            out3 = _gated_call(a3, b3, self.gated_wt, self.gated_bt,
                               self.gated_wv, self.gated_bv)
        else:
            raise ValueError(f"unknown fs_type {fs_type}")

        return out3.reshape(N, C, H, W)

    def __call__(self, v_feat, t_feat, fs_type):
        if isinstance(v_feat, (tuple, list)):
            return [self._fuse_one(v_feat[i], t_feat[i], fs_type)
                    for i in range(len(v_feat))]
        return self._fuse_one(v_feat, t_feat, fs_type)


# -----------------------------------------------------------------------------
# Pure-JAX reference (mirrors the PyTorch semantics) for correctness checking
# -----------------------------------------------------------------------------
def _ref_fuse(model, v, t, fs_type):
    if fs_type == "add":
        return v + t
    if fs_type == "avg":
        return (v + t) / 2
    if fs_type == "max":
        return jnp.maximum(v, t)
    if fs_type == "spa":
        s1 = jnp.mean(v, axis=1, keepdims=True)
        s2 = jnp.mean(t, axis=1, keepdims=True)
        e1, e2 = jnp.exp(s1), jnp.exp(s2)
        w1 = e1 / (e1 + e2 + EPSILON)
        w2 = e2 / (e1 + e2 + EPSILON)
        return w1 * v + w2 * t
    hi = jax.lax.Precision.HIGHEST
    if fs_type in ("cat", "cat2"):
        w1 = model.cat_w1 if fs_type == "cat" else model.cat2_w1
        w2 = model.cat_w2 if fs_type == "cat" else model.cat2_w2
        b = model.cat_b if fs_type == "cat" else model.cat2_b
        out = (jnp.einsum("oc,nchw->nohw", w1, v, precision=hi)
               + jnp.einsum("oc,nchw->nohw", w2, t, precision=hi)
               + b[:, 0][None, :, None, None])
        return out
    if fs_type == "gated":
        tl = (jnp.einsum("oc,nchw->nohw", model.gated_wt, v, precision=hi)
              + model.gated_bt[:, 0][None, :, None, None])
        vl = (jnp.einsum("oc,nchw->nohw", model.gated_wv, t, precision=hi)
              + model.gated_bv[:, 0][None, :, None, None])
        return jax.nn.sigmoid(tl) * v + jax.nn.sigmoid(vl) * t
    raise ValueError(fs_type)


if __name__ == "__main__":
    key = jax.random.PRNGKey(0)
    N, C, H, W = 2, 8, 16, 16
    k1, k2, k3, k4 = jax.random.split(key, 4)

    # multi-level (list) inputs, as the detector passes FPN feature tuples
    v_feats = [jax.random.normal(k1, (N, C, H, W), jnp.float32),
               jax.random.normal(k2, (N, C, H // 2, W // 2), jnp.float32)]
    t_feats = [jax.random.normal(k3, (N, C, H, W), jnp.float32),
               jax.random.normal(k4, (N, C, H // 2, W // 2), jnp.float32)]

    model = FusionStrategyPallas(in_channels=C)

    for fs_type in ("add", "avg", "max", "spa", "cat", "cat2", "gated"):
        outs = model(v_feats, t_feats, fs_type)
        outs = [jax.block_until_ready(o) for o in outs]
        for o, vf, tf in zip(outs, v_feats, t_feats):
            ref = _ref_fuse(model, vf, tf, fs_type)
            assert o.shape == vf.shape, fs_type
            assert jnp.allclose(o, ref, atol=1e-5, rtol=1e-5), fs_type

    print("KERNEL_OK")
</pallas_src>

<mosaic_0001>
module attributes {stable_mosaic.version = 11 : i64} {
  func.func @_ew_kernel(%arg0: i32, %arg1: i32, %arg2: memref<8x256xf32, #tpu.memory_space<vmem>>, %arg3: memref<8x256xf32, #tpu.memory_space<vmem>>, %arg4: memref<8x256xf32, #tpu.memory_space<vmem>>) attributes {dimension_semantics = [#tpu.dimension_semantics<parallel>, #tpu.dimension_semantics<parallel>], iteration_bounds = array<i64: 2, 1>, scalar_prefetch = 0 : i64, scratch_operands = 0 : i64, tpu.core_type = #tpu.core_type<tc>, window_params = [{transform_indices = @transform_0, window_bounds = array<i64: 8, 256>}, {transform_indices = @transform_1, window_bounds = array<i64: 8, 256>}, {transform_indices = @transform_2, window_bounds = array<i64: 8, 256>}]} {
    %c0 = arith.constant 0 : index
    %c0_0 = arith.constant 0 : index
    %0 = vector.load %arg2[%c0, %c0_0] : memref<8x256xf32, #tpu.memory_space<vmem>>, vector<8x256xf32>
    %c0_1 = arith.constant 0 : index
    %c0_2 = arith.constant 0 : index
    %1 = vector.load %arg3[%c0_1, %c0_2] : memref<8x256xf32, #tpu.memory_space<vmem>>, vector<8x256xf32>
    %2 = arith.addf %0, %1 : vector<8x256xf32>
    %c0_3 = arith.constant 0 : index
    %c0_4 = arith.constant 0 : index
    %3 = vector.load %arg4[%c0_3, %c0_4] : memref<8x256xf32, #tpu.memory_space<vmem>>, vector<8x256xf32>
    tpu.vector_store %arg4[%c0_3, %c0_4], %2 {strides = array<i32>} : memref<8x256xf32, #tpu.memory_space<vmem>>, vector<8x256xf32>,
    return
  }
  func.func @transform_0(%arg0: i32, %arg1: i32) -> (i32, i32) {
    %c0_i32 = arith.constant 0 : i32
    return %arg0, %arg1 : i32, i32
  }
  func.func @transform_1(%arg0: i32, %arg1: i32) -> (i32, i32) {
    %c0_i32 = arith.constant 0 : i32
    return %arg0, %arg1 : i32, i32
  }
  func.func @transform_2(%arg0: i32, %arg1: i32) -> (i32, i32) {
    %c0_i32 = arith.constant 0 : i32
    return %arg0, %arg1 : i32, i32
  }
}

</mosaic_0001>

<llo_original>
// kernel: tpu_custom_call.1
$region0: #{tpu_custom_call.1}
  #allocation0 [shape = 'u32[]', space=smem, size = 0x4, offset = 0x4, fixed_abs, tag = 'smem constant byte address 0x4 - core index']
  #allocation1 [shape = 'u32[144,128]{1,0:T(1,128)}', space=vmem, size = 0x12000, scoped, tag = 'internal scratch']
  %s0 = inlined_call_operand.hbm [shape: f32[16,256], index: 0, kind: input, shape index: {}]
  %s1 = inlined_call_operand.hbm [shape: f32[16,256], index: 1, kind: input, shape index: {}]
  %s2 = inlined_call_operand.hbm [shape: f32[16,256], index: 2, kind: output, shape index: {}]
  %s3 = sld [smem:[#allocation0]]
  $region49: #{tpu_custom_call.1} parent=0
    _
  %s5 = ssub.s32 1, %s3
  %s6 = scalar_select 0, %s5, %s3
  $region1: #{tpu_custom_call.1} parent=0
    #allocation2 [shape = 'u8[16384]{0}', space=vmem, size = 0x4000, scoped, tag = 'input window, operand 0']
    #allocation3 [shape = 's32[2]{0}', space=sflag, size = 0x8, scoped, tag = 'scoped memory for tpu_custom_call.1']
    #allocation4 [shape = 's32[2]{0}', space=sflag, size = 0x8, scoped, tag = 'scoped memory for tpu_custom_call.1']
    #allocation5 [shape = 'u8[16384]{0}', space=vmem, size = 0x4000, scoped, tag = 'input window, operand 1']
    #allocation6 [shape = 's32[2]{0}', space=sflag, size = 0x8, scoped, tag = 'scoped memory for tpu_custom_call.1']
    #allocation7 [shape = 'u8[16384]{0}', space=vmem, size = 0x4000, scoped, tag = 'output window, operand 0']
    %7 = vsyncpa [#allocation3], 0
    %s8 = scalar_lea.sflag [#allocation3], 1
    %9 = vsyncpa %s8, 0
    %10 = vsyncpa [#allocation6], 0
    %s11 = scalar_lea.sflag [#allocation6], 1
    %12 = vsyncpa %s11, 0
    %13 = vsyncpa [#allocation4], 0
    %s14 = scalar_lea.sflag [#allocation4], 1
    %15 = vsyncpa %s14, 0
    loop: start=0, step=1, limit=4
    $region2: #{tpu_custom_call.1} parent=1 // loop_pre_header
      _
    $region3: #{tpu_custom_call.1} parent=1 // loop_header
      %s17 = sphi 0, %s21
      %p18 = scmp.ge.s32.totalorder %s17, 4
      %s24 = sphi 0, %s36
      %s25 = sphi 0, %s32
      %s26 = sphi 0, %s24
      %s27 = sphi 0, %s25
      %s28 = sphi 0, %s26
      %s29 = sphi 0, %s27
      %s41 = sphi 0, %s43
      %s44 = sphi 0, %s41
      %s45 = sphi 0, %s44
      %s61 = sphi 0, %s45
      %s69 = sphi 0, %s71
      %s72 = sphi 0, %s69
      %s73 = sphi 0, %s72
      %s89 = sphi 0, %s73
      %s97 = sphi 0, %s99
      %s100 = sphi 0, %s97
      %s101 = sphi 0, %s100
      %s117 = sphi 0, %s101
    $region4: #{tpu_custom_call.1} parent=1 // loop_header_branch
      %20 = sbr.rel (%p18) target = $region8
    $region5: #{tpu_custom_call.1} parent=1 // loop_body
      %s22 = ssub.s32 %s17, 1
      %s23 = ssub.s32 %s17, 2
      %s30 = sadd.s32 1, %s25
      %p31 = scmp.ge.s32.totalorder %s30, 1
      %s32 = scalar_select %p31, 0, %s30
      %s33 = sadd.s32 1, %s24
      %s34 = scalar_select %p31, %s33, %s24
      %p35 = scmp.ge.s32.totalorder %s34, 2
      %s36 = scalar_select %p35, 0, %s34
      %s37 = ssub.s32 %s24, %s36
      %s38 = ssub.s32 %s25, %s32
      %s39 = sor.u32 %s37, %s38
      %p40 = scmp.eq.s32.totalorder %s39, 0
      %s42 = sadd.s32 %s41, 1
      %s43 = scalar_select %p40, %s41, %s42
      %p46 = pneg %p40
      %p47 = scmp.eq.s32.totalorder %s17, 1
      %p48 = por %p46, %p47
      %p49 = scmp.ne.s32.totalorder %s41, %s44
      %p50 = scmp.eq.s32.totalorder %s17, 0
      %p51 = por %p49, %p50
      %p52 = scmp.ne.s32.totalorder %s41, %s44
      %p53 = scmp.eq.s32.totalorder %s22, 1
      %p54 = por %p52, %p53
      %p55 = scmp.ne.s32.totalorder %s44, %s45
      %p56 = scmp.eq.s32.totalorder %s22, 0
      %p57 = por %p55, %p56
      %p58 = scmp.ne.s32.totalorder %s44, %s45
      %p59 = scmp.eq.s32.totalorder %s23, 1
      %p60 = por %p58, %p59
      %p62 = scmp.ne.s32.totalorder %s45, %s61
      %p63 = scmp.eq.s32.totalorder %s23, 0
      %p64 = por %p62, %p63
      %s65 = ssub.s32 %s24, %s36
      %s66 = ssub.s32 %s25, %s32
      %s67 = sor.u32 %s65, %s66
      %p68 = scmp.eq.s32.totalorder %s67, 0
      %s70 = sadd.s32 %s69, 1
      %s71 = scalar_select %p68, %s69, %s70
      %p74 = pneg %p68
      %p75 = scmp.eq.s32.totalorder %s17, 1
      %p76 = por %p74, %p75
      %p77 = scmp.ne.s32.totalorder %s69, %s72
      %p78 = scmp.eq.s32.totalorder %s17, 0
      %p79 = por %p77, %p78
      %p80 = scmp.ne.s32.totalorder %s69, %s72
      %p81 = scmp.eq.s32.totalorder %s22, 1
      %p82 = por %p80, %p81
      %p83 = scmp.ne.s32.totalorder %s72, %s73
      %p84 = scmp.eq.s32.totalorder %s22, 0
      %p85 = por %p83, %p84
      %p86 = scmp.ne.s32.totalorder %s72, %s73
      %p87 = scmp.eq.s32.totalorder %s23, 1
      %p88 = por %p86, %p87
      %p90 = scmp.ne.s32.totalorder %s73, %s89
      %p91 = scmp.eq.s32.totalorder %s23, 0
      %p92 = por %p90, %p91
      %s93 = ssub.s32 %s24, %s36
      %s94 = ssub.s32 %s25, %s32
      %s95 = sor.u32 %s93, %s94
      %p96 = scmp.eq.s32.totalorder %s95, 0
      %s98 = sadd.s32 %s97, 1
      %s99 = scalar_select %p96, %s97, %s98
      %p102 = pneg %p96
      %p103 = scmp.eq.s32.totalorder %s17, 1
      %p104 = por %p102, %p103
      %p105 = scmp.ne.s32.totalorder %s97, %s100
      %p106 = scmp.eq.s32.totalorder %s17, 0
      %p107 = por %p105, %p106
      %p108 = scmp.ne.s32.totalorder %s97, %s100
      %p109 = scmp.eq.s32.totalorder %s22, 1
      %p110 = por %p108, %p109
      %p111 = scmp.ne.s32.totalorder %s100, %s101
      %p112 = scmp.eq.s32.totalorder %s22, 0
      %p113 = por %p111, %p112
      %p114 = scmp.ne.s32.totalorder %s100, %s101
      %p115 = scmp.eq.s32.totalorder %s23, 1
      %p116 = por %p114, %p115
      %p118 = scmp.ne.s32.totalorder %s101, %s117
      %p119 = scmp.eq.s32.totalorder %s23, 0
      %p120 = por %p118, %p119
      %p121 = scmp.le.s32.totalorder 1, %s17
      %p122 = scmp.lt.s32.totalorder %s17, 3
      %p123 = pnand %p121, %p122
      %p124 = pneg %p123
      // Predicated region
      $region9: #{tpu_custom_call.1} parent=5 // pred_check
        _
      $region10: #{tpu_custom_call.1} parent=5 // pred_check_branch
        %126 = sbr.rel (%p123) target = $region12
      $region11: #{tpu_custom_call.1} parent=5 // pred_region
        %s127 = ssub.s32 %s17, 1
      $region12: #{tpu_custom_call.1} parent=5 // pred_fallthru
        _
      %p128 = scmp.lt.s32.totalorder %s17, 2
      // Predicated region
      $region13: #{tpu_custom_call.1} parent=5 // pred_check
        %p129 = pneg %p128
      $region14: #{tpu_custom_call.1} parent=5 // pred_check_branch
        %131 = sbr.rel (%p129) target = $region16
      $region15: #{tpu_custom_call.1} parent=5 // pred_region
        // Predicated region
        $region17: #{tpu_custom_call.1} parent=15 // pred_check
          %p132 = pneg %p51
        $region18: #{tpu_custom_call.1} parent=15 // pred_check_branch
          %134 = sbr.rel (%p132) target = $region20
        $region19: #{tpu_custom_call.1} parent=15 // pred_region
          %s135 = sand.u32 %s41, 1
          %s136 = scalar_lea.sflag [#allocation3], %s135
          %s137 = sand.u32 %s41, 1
          %s138 = smul.addr %s137, 16
          %s139 = scalar_lea.vmem [#allocation2], %s138
          %s140 = smul.u32 2, %s25
          %s142 = ssub.s32 256, 256
          %143 = vsyncadd %s136, %s142
          %s144 = smul.addr %s24, 2
          %s145 = sadd.s32 %s140, %s144
          %s146 = smul.addr %s145, 128
          %s147 = scalar_lea.hbm %s0, %s146
          %s149 = sshll.u32 %s139, 4
          %s150 = int_to_ptr.vmem [resolvable:$true] %s149
          %152 = dma.hbm_to_vmem [thread:$0]  %s147, 256, %s150, %s136
        $region20: #{tpu_custom_call.1} parent=15 // pred_fallthru
          _
        // Predicated region
        $region21: #{tpu_custom_call.1} parent=15 // pred_check
          %p153 = pneg %p79
        $region22: #{tpu_custom_call.1} parent=15 // pred_check_branch
          %155 = sbr.rel (%p153) target = $region24
        $region23: #{tpu_custom_call.1} parent=15 // pred_region
          %s156 = sand.u32 %s69, 1
          %s157 = scalar_lea.sflag [#allocation6], %s156
          %s158 = sand.u32 %s69, 1
          %s159 = smul.addr %s158, 16
          %s160 = scalar_lea.vmem [#allocation5], %s159
          %s161 = smul.u32 2, %s25
          %s163 = ssub.s32 256, 256
          %164 = vsyncadd %s157, %s163
          %s165 = smul.addr %s24, 2
          %s166 = sadd.s32 %s161, %s165
          %s167 = smul.addr %s166, 128
          %s168 = scalar_lea.hbm %s1, %s167
          %s170 = sshll.u32 %s160, 4
          %s171 = int_to_ptr.vmem [resolvable:$true] %s170
          %173 = dma.hbm_to_vmem [thread:$0]  %s168, 256, %s171, %s157
        $region24: #{tpu_custom_call.1} parent=15 // pred_fallthru
          _
      $region16: #{tpu_custom_call.1} parent=5 // pred_fallthru
        _
      %p174 = scmp.le.s32.totalorder 1, %s17
      %p175 = scmp.lt.s32.totalorder %s17, 3
      %p176 = pnand %p174, %p175
      %p177 = pneg %p176
      // Predicated region
      $region25: #{tpu_custom_call.1} parent=5 // pred_check
        _
      $region26: #{tpu_custom_call.1} parent=5 // pred_check_branch
        %179 = sbr.rel (%p176) target = $region28
      $region27: #{tpu_custom_call.1} parent=5 // pred_region
        %s180 = ssub.s32 %s17, 1
        %s181 = sand.u32 %s44, 1
        %s182 = scalar_lea.sflag [#allocation3], %s181
        %s183 = sand.u32 %s44, 1
        %s184 = smul.addr %s183, 16
        %s185 = scalar_lea.vmem [#allocation2], %s184
        // Predicated region
        $region29: #{tpu_custom_call.1} parent=27 // pred_check
          %p186 = pneg %p57
        $region30: #{tpu_custom_call.1} parent=27 // pred_check_branch
          %188 = sbr.rel (%p186) target = $region32
        $region31: #{tpu_custom_call.1} parent=27 // pred_region
          %189 = dma.done %s182, 256
        $region32: #{tpu_custom_call.1} parent=27 // pred_fallthru
          _
        %s190 = sand.u32 %s72, 1
        %s191 = scalar_lea.sflag [#allocation6], %s190
        %s192 = sand.u32 %s72, 1
        %s193 = smul.addr %s192, 16
        %s194 = scalar_lea.vmem [#allocation5], %s193
        // Predicated region
        $region33: #{tpu_custom_call.1} parent=27 // pred_check
          %p195 = pneg %p85
        $region34: #{tpu_custom_call.1} parent=27 // pred_check_branch
          %197 = sbr.rel (%p195) target = $region36
        $region35: #{tpu_custom_call.1} parent=27 // pred_region
          %198 = dma.done %s191, 256
        $region36: #{tpu_custom_call.1} parent=27 // pred_fallthru
          _
        %s199 = sand.u32 %s44, 1
        %s200 = scalar_lea.sflag [#allocation3], %s199
        %s201 = sand.u32 %s44, 1
        %s202 = smul.addr %s201, 16
        %s203 = scalar_lea.vmem [#allocation2], %s202
        %p204 = pneg %p57
        %p205 = pneg %p54
        %s206 = sand.u32 %s72, 1
        %s207 = scalar_lea.sflag [#allocation6], %s206
        %s208 = sand.u32 %s72, 1
        %s209 = smul.addr %s208, 16
        %s210 = scalar_lea.vmem [#allocation5], %s209
        %p211 = pneg %p85
        %p212 = pneg %p82
        %p213 = pneg %p113
        %p214 = pneg %p110
        %s215 = sand.u32 %s100, 1
        %s216 = scalar_lea.sflag [#allocation4], %s215
        %s217 = sand.u32 %s100, 1
        %s218 = smul.addr %s217, 16
        %s219 = scalar_lea.vmem [#allocation7], %s218
        %s220 = smul.u32 2, %s27
        %s221 = smul.u32 2, %s27
        %s222 = smul.u32 2, %s27
        %v223 = vld [vmem:[%s185] sm:$0xff]
        %v224 = vld [vmem:[%s185 + $0x8] sm:$0xff]
        %v225 = vld [vmem:[%s194] sm:$0xff]
        %v226 = vld [vmem:[%s194 + $0x8] sm:$0xff]
        %v227 = vadd.f32 %v223, %v225
        %v228 = vadd.f32 %v224, %v226
        %229 = vst [vmem:[%s219] sm:$0xff] %v227
        %230 = vst [vmem:[%s219 + $0x8] sm:$0xff] %v228
        %s231 = sand.u32 %s100, 1
        %s232 = scalar_lea.sflag [#allocation4], %s231
        %s233 = sand.u32 %s100, 1
        %s234 = smul.addr %s233, 16
        %s235 = scalar_lea.vmem [#allocation7], %s234
        // Predicated region
        $region37: #{tpu_custom_call.1} parent=27 // pred_check
          %p236 = pneg %p110
        $region38: #{tpu_custom_call.1} parent=27 // pred_check_branch
          %238 = sbr.rel (%p236) target = $region40
        $region39: #{tpu_custom_call.1} parent=27 // pred_region
          %s239 = smul.u32 2, %s27
          %s241 = ssub.s32 256, 256
          %242 = vsyncadd %s232, %s241
          %s243 = smul.addr %s26, 2
          %s244 = sadd.s32 %s239, %s243
          %s245 = smul.addr %s244, 128
          %s246 = scalar_lea.hbm %s2, %s245
          %s248 = sshll.u32 %s235, 4
          %s249 = int_to_ptr.vmem [resolvable:$true] %s248
          %251 = dma.vmem_to_hbm [thread:$0]  %s249, 256, %s246, %s232
        $region40: #{tpu_custom_call.1} parent=27 // pred_fallthru
          _
      $region28: #{tpu_custom_call.1} parent=5 // pred_fallthru
        _
      %p252 = scmp.le.s32.totalorder 2, %s17
      // Predicated region
      $region41: #{tpu_custom_call.1} parent=5 // pred_check
        %p253 = pneg %p252
      $region42: #{tpu_custom_call.1} parent=5 // pred_check_branch
        %255 = sbr.rel (%p253) target = $region44
      $region43: #{tpu_custom_call.1} parent=5 // pred_region
        %s256 = ssub.s32 %s17, 2
        // Predicated region
        $region45: #{tpu_custom_call.1} parent=43 // pred_check
          %p257 = pneg %p116
        $region46: #{tpu_custom_call.1} parent=43 // pred_check_branch
          %259 = sbr.rel (%p257) target = $region48
        $region47: #{tpu_custom_call.1} parent=43 // pred_region
          %s260 = sand.u32 %s101, 1
          %s261 = scalar_lea.sflag [#allocation4], %s260
          %s262 = sand.u32 %s101, 1
          %s263 = smul.addr %s262, 16
          %s264 = scalar_lea.vmem [#allocation7], %s263
          %265 = dma.done %s261, 256
        $region48: #{tpu_custom_call.1} parent=43 // pred_fallthru
          _
      $region44: #{tpu_custom_call.1} parent=5 // pred_fallthru
        _
    $region6: #{tpu_custom_call.1} parent=1 // loop_footer
      %s21 = sadd.s32 1, %s17
    $region7: #{tpu_custom_call.1} parent=1 // loop_footer_branch
      %16 = sbr.rel target = $region3
    $region8: #{tpu_custom_call.1} parent=1 // loop_exit
      _
    %266 = vsyncpa [#allocation3], 1
    %s267 = scalar_lea.sflag [#allocation3], 1
    %268 = vsyncpa %s267, 1
    %269 = vsyncpa [#allocation6], 1
    %s270 = scalar_lea.sflag [#allocation6], 1
    %271 = vsyncpa %s270, 1
    %272 = vsyncpa [#allocation4], 1
    %s273 = scalar_lea.sflag [#allocation4], 1
    %274 = vsyncpa %s273, 1

</llo_original>
